<compile_context>
chip_gen: v6e
topology: v6e:2x2x1
jax: 0.10.0
libtpu: 0.0.40
codegen_flags: <defaults>
</compile_context>

<pallas_src>
import functools
import math

import jax
import jax.numpy as jnp
from jax.experimental import pallas as pl
from jax.experimental.pallas import tpu as pltpu


# ----------------------------- elementwise helpers -----------------------------

def _softplus(x):
    return jnp.maximum(x, 0.0) + jnp.log(1.0 + jnp.exp(-jnp.abs(x)))


def _mish(x):
    return x * jnp.tanh(_softplus(x))


def _sigmoid_ref(x):
    # overflow-free sigmoid (used by the pure-JAX references)
    return jnp.exp(jnp.minimum(x, 0.0)) / (1.0 + jnp.exp(-jnp.abs(x)))


def _full_spec(shape):
    return pl.BlockSpec(shape, lambda *_: (0,) * len(shape))


def _vmem_limit_bytes(*, C, H, io, Tp):
    bf16, f32 = 2, 4
    resident = (io + H) * Tp * bf16 + 2 * C * Tp * f32 + io * Tp * f32
    per_layer_w = (2 * C) * (3 * C + H + C) * bf16 + 3 * (2 * C) * f32 + C * f32
    work = (3 * C) * Tp * f32 + 8 * (2 * C) * Tp * f32
    est = resident + 2 * per_layer_w + work
    return int(min(max(2 * est, 16 * 1024 * 1024), 64 * 1024 * 1024))


# ---- kernel 1: SinusoidalPosEmb + MLP + all-layer diffusion projections (fused) ----

def _diff_mlp_kernel(t_ref, freqs_ref, w1_ref, b1_ref, w2_ref, b2_ref,
                     wdiff_ref, bdiff_ref, o_ref):
    # t: (B,1)  freqs: (1,half)  w1:(C,4C) w2:(4C,C)  wdiff:(C,L*C)  out:(B,L*C)
    arg = t_ref[...] * freqs_ref[...]                                    # (B, half) f32
    emb = jnp.concatenate([jnp.sin(arg), jnp.cos(arg)], axis=-1)         # (B, C)
    h = jnp.dot(emb.astype(w1_ref.dtype), w1_ref[...],
                preferred_element_type=jnp.float32) + b1_ref[...]        # (B, 4C)
    h = _mish(h)
    d = jnp.dot(h.astype(w2_ref.dtype), w2_ref[...],
                preferred_element_type=jnp.float32) + b2_ref[...]        # (B, C)
    dp = jnp.dot(d.astype(wdiff_ref.dtype), wdiff_ref[...],
                 preferred_element_type=jnp.float32) + bdiff_ref[...]    # (B, L*C)
    o_ref[...] = dp.astype(o_ref.dtype)


# ---- kernel 2: input proj + all residual layers + output head, single call ----

def _wavenet_fused_kernel(x_in_ref, cond_ref, diff_ref,
                          w_in_ref, b_in_ref,
                          wdil_ref, bdil_ref, wcond_ref, bcond_ref,
                          wout_ref, bout_ref,
                          w_skip_ref, b_skip_ref, w_out_ref, b_out_ref,
                          o_ref, x_sc, skip_sc,
                          *, n_layers, n_dilates, n_chans, t_valid, t_pad):
    C = n_chans
    mx = jnp.bfloat16                       # MXU operand dtype
    l = pl.program_id(1)

    # layer 0: input_projection (1x1 conv) + ReLU, zero the skip accumulator
    @pl.when(l == 0)
    def _init():
        x0 = jnp.dot(w_in_ref[...], x_in_ref[0],
                     preferred_element_type=jnp.float32) + b_in_ref[...]   # (C, Tp)
        x_sc[...] = jnp.maximum(x0, 0.0)
        skip_sc[...] = jnp.zeros_like(skip_sc)

    # ---------------- residual block for layer l ----------------
    col = jax.lax.broadcasted_iota(jnp.int32, (1, t_pad), 1)
    x = x_sc[...]                                                          # (C, Tp) f32
    dcol = diff_ref[0, 0]                                                  # (C, 1)  f32
    # y = x + diffusion bias; zero padded time columns so the conv taps see the same
    # zero padding as Conv1d(padding=dilation).
    y = jnp.where(col < t_valid, x + dcol, 0.0)

    # dilated conv k=3 as a single (2C,3C)x(3C,Tp) dot: build [y(t-d); y(t); y(t+d)]
    # with XLU rolls + boundary masks.  dilation = 2**(l % n_dilates) is grid-dependent,
    # so select branch-free over the n_dilates static shifts.
    lsel = l % n_dilates
    left = jnp.zeros_like(y)
    right = jnp.zeros_like(y)
    for i in range(n_dilates):
        dd = 2 ** i
        w_i = (lsel == i).astype(jnp.float32)
        cand_l = jnp.where(col >= dd,
                           pltpu.roll(y, dd, axis=1), jnp.zeros_like(y))           # y[t-dd]
        cand_r = jnp.where(col < t_valid - dd,
                           pltpu.roll(y, t_pad - dd, axis=1), jnp.zeros_like(y))   # y[t+dd]
        left = left + w_i * cand_l
        right = right + w_i * cand_r
    ystack = jnp.concatenate([left, y, right], axis=0).astype(mx)          # (3C, Tp)

    conv = jnp.dot(wdil_ref[0], ystack,
                   preferred_element_type=jnp.float32) + bdil_ref[0]       # (2C, Tp)
    cproj = jnp.dot(wcond_ref[0], cond_ref[0],
                    preferred_element_type=jnp.float32) + bcond_ref[0]     # (2C, Tp)
    y2 = conv + cproj
    gate = y2[:C, :]
    filt = y2[C:, :]
    # stable sigmoid; divide goes to the EUP via approximate reciprocal
    sig = jnp.exp(jnp.minimum(gate, 0.0)) * pl.reciprocal(
        1.0 + jnp.exp(-jnp.abs(gate)), approx=True)
    z = sig * jnp.tanh(filt)                                               # (C, Tp)

    y3 = jnp.dot(wout_ref[0], z.astype(mx),
                 preferred_element_type=jnp.float32) + bout_ref[0]         # (2C, Tp)
    x_sc[...] = (x + y3[:C, :]) * (1.0 / math.sqrt(2.0))
    skip_sc[...] = skip_sc[...] + y3[C:, :]

    # last layer: normalize skips, skip_projection + ReLU, output_projection
    @pl.when(l == n_layers - 1)
    def _final():
        s = (skip_sc[...] * (1.0 / math.sqrt(n_layers))).astype(mx)
        h = jnp.dot(w_skip_ref[...], s,
                    preferred_element_type=jnp.float32) + b_skip_ref[...]  # (C, Tp)
        h = jnp.maximum(h, 0.0).astype(mx)
        o = jnp.dot(w_out_ref[...], h,
                    preferred_element_type=jnp.float32) + b_out_ref[...]   # (io, Tp)
        o_ref[0] = o.astype(o_ref.dtype)


# ----------------------------- full forward -----------------------------

def wavenet_forward(params, spec, diffusion_step, cond):
    """WaveNet.forward(spec [B,F,M,T], diffusion_step [B], cond [B,H,T]) -> [B,F,M,T]."""
    B, F_, M, T = spec.shape
    io = F_ * M
    L = params["n_layers"]
    C = params["n_chans"]
    nd = params["n_dilates"]
    H = cond.shape[1]
    Tp = max(128, ((T + 127) // 128) * 128)
    assert 2 ** (nd - 1) < Tp
    mx = jnp.bfloat16

    pad_t = ((0, 0), (0, 0), (0, Tp - T))
    x_in = jnp.pad(spec.reshape(B, io, T).astype(jnp.float32), pad_t).astype(mx)
    cond_p = jnp.pad(cond.astype(jnp.float32), pad_t).astype(mx)
    t2 = diffusion_step.astype(jnp.float32).reshape(B, 1)

    # --- kernel 1: sinusoidal embedding + MLP + stacked per-layer diffusion projections ---
    dproj = pl.pallas_call(
        _diff_mlp_kernel,
        out_shape=jax.ShapeDtypeStruct((B, L * C), jnp.float32),
        in_specs=[_full_spec((B, 1)), _full_spec(params["freqs"].shape),
                  _full_spec(params["mlp_w1"].shape), _full_spec(params["mlp_b1"].shape),
                  _full_spec(params["mlp_w2"].shape), _full_spec(params["mlp_b2"].shape),
                  _full_spec(params["wdiff_all"].shape), _full_spec(params["bdiff_all"].shape)],
        out_specs=_full_spec((B, L * C)),
    )(t2, params["freqs"],
      params["mlp_w1"].astype(mx), params["mlp_b1"],
      params["mlp_w2"].astype(mx), params["mlp_b2"],
      params["wdiff_all"].astype(mx), params["bdiff_all"])
    diff_blc = dproj.reshape(B, L, C)[..., None]                           # (B, L, C, 1)

    # --- kernel 2: everything else in one fused call ---
    kernel = functools.partial(_wavenet_fused_kernel, n_layers=L, n_dilates=nd,
                               n_chans=C, t_valid=T, t_pad=Tp)
    flops = 2 * B * L * Tp * (2 * C) * (3 * C + H + C) + 2 * B * Tp * C * (2 * io + C)
    transcendentals = 4 * B * L * C * Tp
    bytes_accessed = (B * (io + H) * Tp) * 2 + B * io * Tp * 4 + B * L * C * 4 \
        + B * L * (2 * C) * (3 * C + H + C) * 2

    out = pl.pallas_call(
        kernel,
        out_shape=jax.ShapeDtypeStruct((B, io, Tp), jnp.float32),
        grid=(B, L),
        in_specs=[
            pl.BlockSpec((1, io, Tp), lambda b, l: (b, 0, 0)),        # flattened spec
            pl.BlockSpec((1, H, Tp), lambda b, l: (b, 0, 0)),         # cond (resident over l)
            pl.BlockSpec((1, 1, C, 1), lambda b, l: (b, l, 0, 0)),    # per-layer diffusion bias
            pl.BlockSpec((C, io), lambda b, l: (0, 0)),               # w_in
            pl.BlockSpec((C, 1), lambda b, l: (0, 0)),                # b_in
            pl.BlockSpec((1, 2 * C, 3 * C), lambda b, l: (l, 0, 0)),  # wdil (stacked taps)
            pl.BlockSpec((1, 2 * C, 1), lambda b, l: (l, 0, 0)),      # bdil
            pl.BlockSpec((1, 2 * C, H), lambda b, l: (l, 0, 0)),      # wcond
            pl.BlockSpec((1, 2 * C, 1), lambda b, l: (l, 0, 0)),      # bcond
            pl.BlockSpec((1, 2 * C, C), lambda b, l: (l, 0, 0)),      # wout
            pl.BlockSpec((1, 2 * C, 1), lambda b, l: (l, 0, 0)),      # bout
            pl.BlockSpec((C, C), lambda b, l: (0, 0)),                # w_skip
            pl.BlockSpec((C, 1), lambda b, l: (0, 0)),                # b_skip
            pl.BlockSpec((io, C), lambda b, l: (0, 0)),               # w_out (head)
            pl.BlockSpec((io, 1), lambda b, l: (0, 0)),               # b_out (head)
        ],
        out_specs=pl.BlockSpec((1, io, Tp), lambda b, l: (b, 0, 0)),
        scratch_shapes=[pltpu.VMEM((C, Tp), jnp.float32),             # residual stream x
                        pltpu.VMEM((C, Tp), jnp.float32)],            # skip accumulator
        compiler_params=pltpu.CompilerParams(
            dimension_semantics=("parallel", "arbitrary"),
            vmem_limit_bytes=_vmem_limit_bytes(C=C, H=H, io=io, Tp=Tp)),
        cost_estimate=pl.CostEstimate(flops=int(flops),
                                      transcendentals=int(transcendentals),
                                      bytes_accessed=int(bytes_accessed)),
    )(x_in, cond_p, diff_blc,
      params["w_in"].astype(mx), params["b_in"],
      params["wdil3"].astype(mx), params["bdil"],
      params["wcond"].astype(mx), params["bcond"],
      params["wout"].astype(mx), params["bout"],
      params["w_skip"].astype(mx), params["b_skip"],
      params["w_out"].astype(mx), params["b_out"])

    return out[:, :, :T].reshape(B, F_, M, T)


# ----------------------------- parameters -----------------------------

def init_params(key, *, in_dims, n_feats, hidden, n_layers, n_chans, n_dilates):
    assert n_chans % 2 == 0, "SinusoidalPosEmb requires an even dim"
    assert n_chans > 2, "dim == 2 divides by zero in the frequency scale"
    half = n_chans // 2
    C, L, H, io = n_chans, n_layers, hidden, in_dims * n_feats

    def w(shape, scale):
        nonlocal key
        key, sub = jax.random.split(key)
        return jax.random.normal(sub, shape, jnp.float32) * scale

    return {
        "n_layers": L, "n_chans": C, "n_dilates": n_dilates,
        # precomputed SinusoidalPosEmb frequency table
        "freqs": jnp.exp(jnp.arange(half, dtype=jnp.float32)
                         * (-math.log(10000.0) / (half - 1))).reshape(1, half),
        "w_in": w((C, io), 1.0 / math.sqrt(io)),
        "b_in": w((C, 1), 0.1),
        "mlp_w1": w((C, 4 * C), 1.0 / math.sqrt(C)),
        "mlp_b1": w((1, 4 * C), 0.1),
        "mlp_w2": w((4 * C, C), 1.0 / math.sqrt(4 * C)),
        "mlp_b2": w((1, C), 0.1),
        # all-layer diffusion projections stacked along the output axis: (C, L*C)
        "wdiff_all": w((C, L * C), 1.0 / math.sqrt(C)),
        "bdiff_all": w((1, L * C), 0.1),
        # per-layer weights stacked with a leading L axis; dilated-conv taps pre-stacked
        # along K so the kernel does a single (2C,3C)x(3C,T) dot.
        "wdil3": w((L, 2 * C, 3 * C), 1.0 / math.sqrt(3 * C)),
        "bdil": w((L, 2 * C, 1), 0.1),
        "wcond": w((L, 2 * C, H), 1.0 / math.sqrt(H)),
        "bcond": w((L, 2 * C, 1), 0.1),
        "wout": w((L, 2 * C, C), 1.0 / math.sqrt(C)),
        "bout": w((L, 2 * C, 1), 0.1),
        "w_skip": w((C, C), 1.0 / math.sqrt(C)),
        "b_skip": w((C, 1), 0.1),
        # NOTE: PyTorch zero-inits output_projection.weight (training detail); random
        # weights keep the numerical check non-trivial.
        "w_out": w((io, C), 1.0 / math.sqrt(C)),
        "b_out": w((io, 1), 0.1),
    }


# ------------- pure-JAX reference (module semantics; `cast` emulates bf16 operands) -------------

def wavenet_reference(params, spec, diffusion_step, cond, cast=jnp.float32):
    hp = jax.lax.Precision.HIGHEST
    cf = lambda a: a.astype(cast).astype(jnp.float32)
    B, F_, M, T = spec.shape
    L, C, nd = params["n_layers"], params["n_chans"], params["n_dilates"]

    x = spec.reshape(B, F_ * M, T).astype(jnp.float32)
    x = jnp.maximum(jnp.einsum("oc,bct->bot", cf(params["w_in"]), cf(x), precision=hp)
                    + params["b_in"][None], 0.0)

    t = diffusion_step.astype(jnp.float32)
    arg = t[:, None] * params["freqs"][0][None, :]
    emb = jnp.concatenate([jnp.sin(arg), jnp.cos(arg)], axis=-1)
    h = _mish(jnp.dot(cf(emb), cf(params["mlp_w1"]), precision=hp) + params["mlp_b1"])
    d = jnp.dot(cf(h), cf(params["mlp_w2"]), precision=hp) + params["mlp_b2"]       # (B, C)
    dstack = (jnp.dot(cf(d), cf(params["wdiff_all"]), precision=hp)
              + params["bdiff_all"]).reshape(B, L, C)                               # (B, L, C)

    condf = cond.astype(jnp.float32)
    skip_sum = jnp.zeros_like(x)
    for l in range(L):
        dd = 2 ** (l % nd)
        W3 = params["wdil3"][l]
        W0, W1, W2 = W3[:, :C], W3[:, C:2 * C], W3[:, 2 * C:]
        y = x + dstack[:, l][:, :, None]
        yc = cf(y)
        ypad = jnp.pad(yc, ((0, 0), (0, 0), (dd, dd)))
        conv = (jnp.einsum("oc,bct->bot", cf(W0), ypad[:, :, 0:T], precision=hp)
                + jnp.einsum("oc,bct->bot", cf(W1), yc, precision=hp)
                + jnp.einsum("oc,bct->bot", cf(W2), ypad[:, :, 2 * dd:2 * dd + T], precision=hp)
                + params["bdil"][l][None])
        cproj = jnp.einsum("oh,bht->bot", cf(params["wcond"][l]), cf(condf), precision=hp) \
            + params["bcond"][l][None]
        y2 = conv + cproj
        gate, filt = y2[:, :C], y2[:, C:]
        z = _sigmoid_ref(gate) * jnp.tanh(filt)
        y3 = jnp.einsum("oc,bct->bot", cf(params["wout"][l]), cf(z), precision=hp) \
            + params["bout"][l][None]
        res, skip = y3[:, :C], y3[:, C:]
        x = (x + res) / math.sqrt(2.0)
        skip_sum = skip_sum + skip

    s = skip_sum / math.sqrt(L)
    hh = jnp.maximum(jnp.einsum("oc,bct->bot", cf(params["w_skip"]), cf(s), precision=hp)
                     + params["b_skip"][None], 0.0)
    o = jnp.einsum("oc,bct->bot", cf(params["w_out"]), cf(hh), precision=hp) + params["b_out"][None]
    return o.reshape(B, F_, M, T)


if __name__ == "__main__":
    # Small shapes consistent with the module: spec [B, F, M, T], t [B], cond [B, H, T]
    B, in_dims, n_feats, T = 2, 16, 1, 16
    hidden, n_layers, n_chans, n_dilates = 32, 4, 32, 4

    key = jax.random.PRNGKey(0)
    k1, k2, k3, kp = jax.random.split(key, 4)
    spec = jax.random.normal(k1, (B, n_feats, in_dims, T), jnp.float32)
    cond = jax.random.normal(k2, (B, hidden, T), jnp.float32)
    diffusion_step = jax.random.uniform(k3, (B,), jnp.float32, 0.0, 100.0)

    params = init_params(kp, in_dims=in_dims, n_feats=n_feats, hidden=hidden,
                         n_layers=n_layers, n_chans=n_chans, n_dilates=n_dilates)

    out = jax.block_until_ready(wavenet_forward(params, spec, diffusion_step, cond))
    assert out.shape == (B, n_feats, in_dims, T)

    # tight check against a reference that mirrors the kernel's bf16 matmul operands
    ref_emul = wavenet_reference(params, spec, diffusion_step, cond, cast=jnp.bfloat16)
    err_emul = float(jnp.max(jnp.abs(out - ref_emul)))
    assert jnp.allclose(out, ref_emul, atol=3e-2, rtol=3e-2), err_emul

    # loose sanity check against full-f32 module semantics (bf16 MXU operands inside)
    ref_f32 = wavenet_reference(params, spec, diffusion_step, cond, cast=jnp.float32)
    err_f32 = float(jnp.max(jnp.abs(out - ref_f32)))
    assert err_f32 < 0.5, err_f32

    print("KERNEL_OK")
</pallas_src>

<mosaic_0001>
module attributes {stable_mosaic.version = 11 : i64} {
  func.func @_diff_mlp_kernel(%arg0: memref<2x1xf32, #tpu.memory_space<vmem>>, %arg1: memref<1x16xf32, #tpu.memory_space<vmem>>, %arg2: memref<32x128xbf16, #tpu.memory_space<vmem>>, %arg3: memref<1x128xf32, #tpu.memory_space<vmem>>, %arg4: memref<128x32xbf16, #tpu.memory_space<vmem>>, %arg5: memref<1x32xf32, #tpu.memory_space<vmem>>, %arg6: memref<32x128xbf16, #tpu.memory_space<vmem>>, %arg7: memref<1x128xf32, #tpu.memory_space<vmem>>, %arg8: memref<2x128xf32, #tpu.memory_space<vmem>>) attributes {dimension_semantics = [], scalar_prefetch = 0 : i64, scratch_operands = 0 : i64, tpu.core_type = #tpu.core_type<tc>} {
    %c0 = arith.constant 0 : index
    %c0_0 = arith.constant 0 : index
    %0 = vector.load %arg0[%c0, %c0_0] : memref<2x1xf32, #tpu.memory_space<vmem>>, vector<2x1xf32>
    %c0_1 = arith.constant 0 : index
    %c0_2 = arith.constant 0 : index
    %1 = vector.load %arg1[%c0_1, %c0_2] : memref<1x16xf32, #tpu.memory_space<vmem>>, vector<1x16xf32>
    %2 = vector.broadcast %0 : vector<2x1xf32> to vector<2x16xf32>
    %3 = vector.broadcast %1 : vector<1x16xf32> to vector<2x16xf32>
    %4 = arith.mulf %2, %3 : vector<2x16xf32>
    %5 = math.sin %4 : vector<2x16xf32>
    %6 = math.cos %4 : vector<2x16xf32>
    %7 = tpu.concatenate %5, %6 in 1 : vector<2x16xf32>, vector<2x16xf32> -> vector<2x32xf32>
    %8 = arith.truncf %7 : vector<2x32xf32> to vector<2x32xbf16>
    %c0_3 = arith.constant 0 : index
    %c0_4 = arith.constant 0 : index
    %9 = vector.load %arg2[%c0_3, %c0_4] : memref<32x128xbf16, #tpu.memory_space<vmem>>, vector<32x128xbf16>
    %cst = arith.constant dense<0.000000e+00> : vector<2x128xf32>
    %10 = tpu.matmul %8, %9, %cst {dimension_numbers = #tpu.dot_dimension_numbers<[1], [0], [0], [1], [0, 0, 1, 1], [], []>} : vector<2x32xbf16>, vector<32x128xbf16>, vector<2x128xf32> -> vector<2x128xf32>
    %c0_5 = arith.constant 0 : index
    %c0_6 = arith.constant 0 : index
    %11 = vector.load %arg3[%c0_5, %c0_6] : memref<1x128xf32, #tpu.memory_space<vmem>>, vector<1x128xf32>
    %12 = vector.broadcast %11 : vector<1x128xf32> to vector<2x128xf32>
    %13 = arith.addf %10, %12 : vector<2x128xf32>
    %cst_7 = arith.constant 0.000000e+00 : f32
    %14 = vector.broadcast %cst_7 : f32 to vector<2x128xf32>
    %15 = arith.maximumf %13, %14 : vector<2x128xf32>
    %16 = math.absf %13 : vector<2x128xf32>
    %cst_8 = arith.constant 0.000000e+00 : f32
    %17 = vector.broadcast %cst_8 : f32 to vector<2x128xf32>
    %18 = arith.subf %17, %16 : vector<2x128xf32>
    %19 = math.exp %18 : vector<2x128xf32>
    %cst_9 = arith.constant 1.000000e+00 : f32
    %20 = vector.broadcast %cst_9 : f32 to vector<2x128xf32>
    %21 = arith.addf %20, %19 : vector<2x128xf32>
    %22 = math.log %21 : vector<2x128xf32>
    %23 = arith.addf %15, %22 : vector<2x128xf32>
    %24 = math.tanh %23 : vector<2x128xf32>
    %25 = arith.mulf %13, %24 : vector<2x128xf32>
    %26 = arith.truncf %25 : vector<2x128xf32> to vector<2x128xbf16>
    %c0_10 = arith.constant 0 : index
    %c0_11 = arith.constant 0 : index
    %27 = vector.load %arg4[%c0_10, %c0_11] : memref<128x32xbf16, #tpu.memory_space<vmem>>, vector<128x32xbf16>
    %cst_12 = arith.constant dense<0.000000e+00> : vector<2x32xf32>
    %28 = tpu.matmul %26, %27, %cst_12 {dimension_numbers = #tpu.dot_dimension_numbers<[1], [0], [0], [1], [0, 0, 1, 1], [], []>} : vector<2x128xbf16>, vector<128x32xbf16>, vector<2x32xf32> -> vector<2x32xf32>
    %c0_13 = arith.constant 0 : index
    %c0_14 = arith.constant 0 : index
    %29 = vector.load %arg5[%c0_13, %c0_14] : memref<1x32xf32, #tpu.memory_space<vmem>>, vector<1x32xf32>
    %30 = vector.broadcast %29 : vector<1x32xf32> to vector<2x32xf32>
    %31 = arith.addf %28, %30 : vector<2x32xf32>
    %32 = arith.truncf %31 : vector<2x32xf32> to vector<2x32xbf16>
    %c0_15 = arith.constant 0 : index
    %c0_16 = arith.constant 0 : index
    %33 = vector.load %arg6[%c0_15, %c0_16] : memref<32x128xbf16, #tpu.memory_space<vmem>>, vector<32x128xbf16>
    %cst_17 = arith.constant dense<0.000000e+00> : vector<2x128xf32>
    %34 = tpu.matmul %32, %33, %cst_17 {dimension_numbers = #tpu.dot_dimension_numbers<[1], [0], [0], [1], [0, 0, 1, 1], [], []>} : vector<2x32xbf16>, vector<32x128xbf16>, vector<2x128xf32> -> vector<2x128xf32>
    %c0_18 = arith.constant 0 : index
    %c0_19 = arith.constant 0 : index
    %35 = vector.load %arg7[%c0_18, %c0_19] : memref<1x128xf32, #tpu.memory_space<vmem>>, vector<1x128xf32>
    %36 = vector.broadcast %35 : vector<1x128xf32> to vector<2x128xf32>
    %37 = arith.addf %34, %36 : vector<2x128xf32>
    %c0_20 = arith.constant 0 : index
    %c0_21 = arith.constant 0 : index
    %38 = vector.load %arg8[%c0_20, %c0_21] : memref<2x128xf32, #tpu.memory_space<vmem>>, vector<2x128xf32>
    tpu.vector_store %arg8[%c0_20, %c0_21], %37 {strides = array<i32>} : memref<2x128xf32, #tpu.memory_space<vmem>>, vector<2x128xf32>,
    return
  }
}

</mosaic_0001>

<llo_original>
// kernel: tpu_custom_call.1
$region0: #{tpu_custom_call.1}
  #allocation0 [shape = 'u32[]', space=smem, size = 0x4, offset = 0x4, fixed_abs, tag = 'smem constant byte address 0x4 - core index']
  #allocation1 [shape = 'u32[144,128]{1,0:T(1,128)}', space=vmem, size = 0x12000, scoped, tag = 'internal scratch']
  %s0 = inlined_call_operand.vmem [shape: f32[2,1], index: 0, kind: input, shape index: {}]
  %s1 = inlined_call_operand.vmem [shape: f32[1,16], index: 1, kind: input, shape index: {}]
  %s2 = inlined_call_operand.vmem [shape: bf16[32,128], index: 2, kind: input, shape index: {}]
  %s3 = inlined_call_operand.vmem [shape: f32[1,128], index: 3, kind: input, shape index: {}]
  %s4 = inlined_call_operand.vmem [shape: bf16[128,32], index: 4, kind: input, shape index: {}]
  %s5 = inlined_call_operand.vmem [shape: f32[1,32], index: 5, kind: input, shape index: {}]
  %s6 = inlined_call_operand.vmem [shape: bf16[32,128], index: 6, kind: input, shape index: {}]
  %s7 = inlined_call_operand.vmem [shape: f32[1,128], index: 7, kind: input, shape index: {}]
  %s8 = inlined_call_operand.hbm [shape: f32[2,128], index: 8, kind: output, shape index: {}]
  %s9 = sld [smem:[#allocation0]]
  $region42: #{tpu_custom_call.1} parent=0
    _
  %s11 = ssub.s32 1, %s9
  %s12 = scalar_select 0, %s11, %s9
  $region1: #{tpu_custom_call.1} parent=0
    #allocation2 [shape = 'u8[1024]{0}', space=vmem, size = 0x400, scoped, tag = 'output window, operand 0, single buffered']
    #allocation3 [shape = 's32[1]{0}', space=sflag, size = 0x4, scoped, tag = 'scoped memory for tpu_custom_call.1']
    %13 = vsyncpa [#allocation3], 0
    // Predicated region
    $region2: #{tpu_custom_call.1} parent=1 // pred_check
      _
    $region3: #{tpu_custom_call.1} parent=1 // pred_check_branch
      %15 = sbr.rel (0) target = $region5
    $region4: #{tpu_custom_call.1} parent=1 // pred_region
      _
    $region5: #{tpu_custom_call.1} parent=1 // pred_fallthru
      _
    // Predicated region
    $region6: #{tpu_custom_call.1} parent=1 // pred_check
      _
    $region7: #{tpu_custom_call.1} parent=1 // pred_check_branch
      %17 = sbr.rel (0) target = $region9
    $region8: #{tpu_custom_call.1} parent=1 // pred_region
      _
    $region9: #{tpu_custom_call.1} parent=1 // pred_fallthru
      _
    // Predicated region
    $region10: #{tpu_custom_call.1} parent=1 // pred_check
      _
    $region11: #{tpu_custom_call.1} parent=1 // pred_check_branch
      %19 = sbr.rel (0) target = $region13
    $region12: #{tpu_custom_call.1} parent=1 // pred_region
      _
    $region13: #{tpu_custom_call.1} parent=1 // pred_fallthru
      _
    // Predicated region
    $region14: #{tpu_custom_call.1} parent=1 // pred_check
      _
    $region15: #{tpu_custom_call.1} parent=1 // pred_check_branch
      %21 = sbr.rel (0) target = $region17
    $region16: #{tpu_custom_call.1} parent=1 // pred_region
      _
    $region17: #{tpu_custom_call.1} parent=1 // pred_fallthru
      _
    // Predicated region
    $region18: #{tpu_custom_call.1} parent=1 // pred_check
      _
    $region19: #{tpu_custom_call.1} parent=1 // pred_check_branch
      %23 = sbr.rel (0) target = $region21
    $region20: #{tpu_custom_call.1} parent=1 // pred_region
      _
    $region21: #{tpu_custom_call.1} parent=1 // pred_fallthru
      _
    // Predicated region
    $region22: #{tpu_custom_call.1} parent=1 // pred_check
      _
    $region23: #{tpu_custom_call.1} parent=1 // pred_check_branch
      %25 = sbr.rel (0) target = $region25
    $region24: #{tpu_custom_call.1} parent=1 // pred_region
      _
    $region25: #{tpu_custom_call.1} parent=1 // pred_fallthru
      _
    // Predicated region
    $region26: #{tpu_custom_call.1} parent=1 // pred_check
      _
    $region27: #{tpu_custom_call.1} parent=1 // pred_check_branch
      %27 = sbr.rel (0) target = $region29
    $region28: #{tpu_custom_call.1} parent=1 // pred_region
      _
    $region29: #{tpu_custom_call.1} parent=1 // pred_fallthru
      _
    // Predicated region
    $region30: #{tpu_custom_call.1} parent=1 // pred_check
      _
    $region31: #{tpu_custom_call.1} parent=1 // pred_check_branch
      %29 = sbr.rel (0) target = $region33
    $region32: #{tpu_custom_call.1} parent=1 // pred_region
      _
    $region33: #{tpu_custom_call.1} parent=1 // pred_fallthru
      _
    %v31 = vld [vmem:[%s0] sm:$0x3]
    %v32 = vld [vmem:[%s1] sm:$0x1]
    %34 = vset.pattern.permute.xlu0 0
    %35 = vperm.xlu0 %34, %v31
    %v36 = vpop.permute.xlu0 %35
    %v39 = vlaneseq
    %v40 = vshrl.u32 %v39, 7
    %v41 = vsub.s32 0, %v40
    %v42 = vrot.slane %v32, %v41
    %v44 = vmul.f32 %v36, %v42
    %v45 = vand.u32 2147483647, %v44
    %vm46 = vcmp.le.f32.partialorder %v45, 0.7853982
    %vm47 = vcmp.lt.s32.totalorder %v44, 0
    %v48 = vand.u32 %v44, 2139095040
    %v49 = vshrl.u32 %v48, 23
    %v50 = vsub.s32 %v49, 127
    %v51 = vand.u32 2147483647, %v44
    %v52 = vand.u32 %v51, 8388607
    %v53 = vor.u32 %v52, 8388608
    %v54 = vsub.s32 0, %v53
    %v55 = vadd.s32 %v50, 1
    %vm56 = vcmp.gt.s32.totalorder %v55, 0
    %v57 = vsel %vm56, %v55, 0
    %v58 = vshrl.u32 %v57, 5
    %v59 = vand.u32 %v57, 31
    %v60 = vsub.s32 32, %v59
    %v61 = vshrl.u32 683565275, %v60
    %v62 = vshll.u32 683565275, %v59
    %v63 = vshrl.u32 2475754826, %v60
    %v64 = vor.u32 %v62, %v63
    %v65 = vshll.u32 2475754826, %v59
    %v66 = vshrl.u32 2131351028, %v60
    %v67 = vor.u32 %v65, %v66
    %v68 = vshll.u32 2131351028, %v59
    %v69 = vshrl.u32 2102212464, %v60
    %v70 = vor.u32 %v68, %v69
    %v71 = vshll.u32 2102212464, %v59
    %v72 = vshrl.u32 920167782, %v60
    %v73 = vor.u32 %v71, %v72
    %v74 = vshll.u32 920167782, %v59
    %v75 = vshrl.u32 1326507024, %v60
    %v76 = vor.u32 %v74, %v75
    %vm77 = vcmp.lt.s32.totalorder %v58, 1
    %vm78 = vcmp.lt.s32.totalorder %v58, 2
    %vm79 = vcmp.lt.s32.totalorder %v58, 3
    %vm80 = vcmp.lt.s32.totalorder %v58, 4
    %v81 = vsel %vm77, %v61, %v64
    %v82 = vsel %vm80, %v70, 2102212464
    %v83 = vsel %vm79, %v67, %v82
    %v84 = vsel %vm78, %v81, %v83
    %v85 = vsel %vm77, %v64, %v67
    %v86 = vsel %vm80, %v73, 920167782
    %v87 = vsel %vm79, %v70, %v86
    %v88 = vsel %vm78, %v85, %v87
    %v89 = vsel %vm77, %v67, %v70
    %v90 = vsel %vm80, %v76, 1326507024
    %v91 = vsel %vm79, %v73, %v90
    %v92 = vsel %vm78, %v89, %v91
    %v93 = vshll.u32 %v53, 8
    %v94 = vmul.u32.u64.compose %v93, %v92
    %v95 = vextract.low.u32 %v94
    %v96 = vextract.high.u32 %v94
    %v97 = vmul.u32.u64.compose %v93, %v88
    %v98 = vextract.low.u32 %v97
    %v99 = vextract.high.u32 %v97
    %v100 = vmul.u32 %v93, %v84
    %v101 = vadd.s32 %v96, %v98
    %vm102 = vc.u32 %v96, %v98
    %v103 = vadd.s32 %v99, 1
    %v104 = vsel %vm102, %v103, %v99
    %v105 = vadd.s32 %v100, %v104
    %v106 = vadd.s32 %v105, 536870912
    %v107 = vshrl.u32 %v106, 30
    %v108 = vshll.u32 %v107, 30
    %v109 = vsub.s32 %v105, %v108
    %vm110 = vcmp.lt.s32.totalorder %v109, 0
    %v111 = vsub.s32 0, %v109
    %v112 = vsel %vm110, %v111, %v109
    %v113 = vclz %v112
    %v114 = vsub.s32 %v113, 2
    %vm115 = vcmp.gt.s32.totalorder 0, %v114
    %v116 = vsel %vm115, 0, %v114
    %v117 = vsub.s32 32, %v116
    %v118 = vshll.u32 %v109, %v116
    %v119 = vshrl.u32 %v101, %v117
    %v120 = vor.u32 %v118, %v119
    %v121 = vsub.s32 4294967266, %v116
    %v122 = vadd.s32 %v121, 127
    %v123 = vshll.u32 %v122, 23
    %v124 = vor.u32 4788187, %v123
    %v125 = vand.u32 2147483647, %v124
    %v127 = vcvt.s32.f32 %v120
    %v128 = vmul.f32 %v127, %v125
    %v129 = vxor.u32 %v128, 2147483648
    %v130 = vsel %vm47, %v129, %v128
    %v131 = vsub.s32 4, %v107
    %v132 = vsel %vm47, %v131, %v107
    %v133 = vsel %vm46, %v44, %v130
    %v134 = vsel %vm46, 0, %v132
    %v135 = vcosq.f32.pop %v133
    %v136 = vsinq.f32.pop %v133
    %vm137 = vweird.f32 %v44
    %v138 = vadd.s32 %v134, 3
    %v139 = vand.u32 %v138, 3
    %vm140 = vcmp.lt.s32.totalorder %v139, 2
    %vm141 = vcmp.eq.s32.totalorder %v139, 0
    %v142 = vxor.u32 %v136, 2147483648
    %v143 = vsel %vm141, %v135, %v142
    %vm144 = vcmp.eq.s32.totalorder %v139, 2
    %v145 = vxor.u32 %v135, 2147483648
    %v146 = vsel %vm144, %v145, %v136
    %v147 = vsel %vm140, %v143, %v146
    %v148 = vsel %vm137, nan, %v147
    %v149 = vand.u32 2147483647, %v44
    %vm150 = vcmp.le.f32.partialorder %v149, 0.7853982
    %vm151 = vcmp.lt.s32.totalorder %v44, 0
    %v152 = vand.u32 %v44, 2139095040
    %v153 = vshrl.u32 %v152, 23
    %v154 = vsub.s32 %v153, 127
    %v155 = vand.u32 2147483647, %v44
    %v156 = vand.u32 %v155, 8388607
    %v157 = vor.u32 %v156, 8388608
    %v158 = vsub.s32 0, %v157
    %v159 = vadd.s32 %v154, 1
    %vm160 = vcmp.gt.s32.totalorder %v159, 0
    %v161 = vsel %vm160, %v159, 0
    %v162 = vshrl.u32 %v161, 5
    %v163 = vand.u32 %v161, 31
    %v164 = vsub.s32 32, %v163
    %v165 = vshrl.u32 683565275, %v164
    %v166 = vshll.u32 683565275, %v163
    %v167 = vshrl.u32 2475754826, %v164
    %v168 = vor.u32 %v166, %v167
    %v169 = vshll.u32 2475754826, %v163
    %v170 = vshrl.u32 2131351028, %v164
    %v171 = vor.u32 %v169, %v170
    %v172 = vshll.u32 2131351028, %v163
    %v173 = vshrl.u32 2102212464, %v164
    %v174 = vor.u32 %v172, %v173
    %v175 = vshll.u32 2102212464, %v163
    %v176 = vshrl.u32 920167782, %v164
    %v177 = vor.u32 %v175, %v176
    %v178 = vshll.u32 920167782, %v163
    %v179 = vshrl.u32 1326507024, %v164
    %v180 = vor.u32 %v178, %v179
    %vm181 = vcmp.lt.s32.totalorder %v162, 1
    %vm182 = vcmp.lt.s32.totalorder %v162, 2
    %vm183 = vcmp.lt.s32.totalorder %v162, 3
    %vm184 = vcmp.lt.s32.totalorder %v162, 4
    %v185 = vsel %vm181, %v165, %v168
    %v186 = vsel %vm184, %v174, 2102212464
    %v187 = vsel %vm183, %v171, %v186
    %v188 = vsel %vm182, %v185, %v187
    %v189 = vsel %vm181, %v168, %v171
    %v190 = vsel %vm184, %v177, 920167782
    %v191 = vsel %vm183, %v174, %v190
    %v192 = vsel %vm182, %v189, %v191
    %v193 = vsel %vm181, %v171, %v174
    %v194 = vsel %vm184, %v180, 1326507024
    %v195 = vsel %vm183, %v177, %v194
    %v196 = vsel %vm182, %v193, %v195
    %v197 = vshll.u32 %v157, 8
    %v198 = vmul.u32.u64.compose %v197, %v196
    %v199 = vextract.low.u32 %v198
    %v200 = vextract.high.u32 %v198
    %v201 = vmul.u32.u64.compose %v197, %v192
    %v202 = vextract.low.u32 %v201
    %v203 = vextract.high.u32 %v201
    %v204 = vmul.u32 %v197, %v188
    %v205 = vadd.s32 %v200, %v202
    %vm206 = vc.u32 %v200, %v202
    %v207 = vadd.s32 %v203, 1
    %v208 = vsel %vm206, %v207, %v203
    %v209 = vadd.s32 %v204, %v208
    %v210 = vadd.s32 %v209, 536870912
    %v211 = vshrl.u32 %v210, 30
    %v212 = vshll.u32 %v211, 30
    %v213 = vsub.s32 %v209, %v212
    %vm214 = vcmp.lt.s32.totalorder %v213, 0
    %v215 = vsub.s32 0, %v213
    %v216 = vsel %vm214, %v215, %v213
    %v217 = vclz %v216
    %v218 = vsub.s32 %v217, 2
    %vm219 = vcmp.gt.s32.totalorder 0, %v218
    %v220 = vsel %vm219, 0, %v218
    %v221 = vsub.s32 32, %v220
    %v222 = vshll.u32 %v213, %v220
    %v223 = vshrl.u32 %v205, %v221
    %v224 = vor.u32 %v222, %v223
    %v225 = vsub.s32 4294967266, %v220
    %v226 = vadd.s32 %v225, 127
    %v227 = vshll.u32 %v226, 23
    %v228 = vor.u32 4788187, %v227
    %v229 = vand.u32 2147483647, %v228
    %v231 = vcvt.s32.f32 %v224
    %v232 = vmul.f32 %v231, %v229
    %v233 = vxor.u32 %v232, 2147483648
    %v234 = vsel %vm151, %v233, %v232
    %v235 = vsub.s32 4, %v211
    %v236 = vsel %vm151, %v235, %v211
    %v237 = vsel %vm150, %v44, %v234
    %v238 = vsel %vm150, 0, %v236
    %v239 = vcosq.f32.pop %v237
    %v240 = vsinq.f32.pop %v237
    %vm241 = vweird.f32 %v44
    %v242 = vand.u32 %v238, 3
    %vm243 = vcmp.lt.s32.totalorder %v242, 2
    %vm244 = vcmp.eq.s32.totalorder %v242, 0
    %v245 = vxor.u32 %v240, 2147483648
    %v246 = vsel %vm244, %v239, %v245
    %vm247 = vcmp.eq.s32.totalorder %v242, 2
    %v248 = vxor.u32 %v239, 2147483648
    %v249 = vsel %vm247, %v248, %v240
    %v250 = vsel %vm243, %v246, %v249
    %v251 = vsel %vm241, nan, %v250
    %253 = vrot.lane.b32.xlu0 %v251, 16
    %v254 = vpop.permute.xlu0 %253
    %vm256 = vcmask 130048
    %v257 = vsel %vm256, %v148, %v254
    %v258 = vpack.c.bf16 %v257, %v257
    %v259 = vld [vmem:[%s2] sm:$0xf]
    %v260 = vld [vmem:[%s2 + $0x4] sm:$0xf]
    %v261 = vld [vmem:[%s2 + $0x8] sm:$0xf]
    %v262 = vld [vmem:[%s2 + $0xc] sm:$0xf]
    %v263 = vld [vmem:[%s3] sm:$0x1]
    %v265 = vlaneseq
    %v266 = vshrl.u32 %v265, 7
    %v267 = vsub.s32 0, %v266
    %v268 = vrot.slane %v263, %v267
    %v274 = vunpack.c.l.b16 %v259
    %v275 = vunpack.c.l.b16 %v260
    %v276 = vunpack.c.l.b16 %v261
    %v277 = vunpack.c.l.b16 %v262
    %v278 = vpack.c.b16 %v275, %v274
    %v279 = vpack.c.b16 %v277, %v276
    %vm282 = vcmask 261120
    %v284 = vsel %vm282, %v258, 0
    %286 = vmatprep.subr.bf16.mxu0 0
    %287 = vmatpush1.bf16.msra.mxu0 0
    %288 = vmatprep.subr.bf16.mxu0 0
    %289 = vmatpush1.bf16.msra.mxu0 0
    %290 = vmatprep.subr.bf16.mxu0 0
    %291 = vmatpush1.bf16.msra.mxu0 0
    %292 = vmatprep.subr.bf16.mxu0 0
    %293 = vmatpush1.bf16.msra.mxu0 0
    %294 = vmatprep.subr.bf16.mxu0 0
    %295 = vmatpush1.bf16.msra.mxu0 0
    %296 = vmatprep.subr.bf16.mxu0 0
    %297 = vmatpush1.bf16.msra.mxu0 0
    %298 = vmatprep.subr.bf16.mxu0 0
    %299 = vmatpush1.bf16.msra.mxu0 %v279
    %300 = vmatprep.subr.bf16.mxu0 0
    %301 = vmatpush1.bf16.msra.mxu0 %v278
    %302 = vmatprep.subr.bf16.mxu0 0
    %303 = vmatpush2.bf16.msra.mxu0 0
    %304 = vmatprep.subr.bf16.mxu0 0
    %305 = vmatpush2.bf16.msra.mxu0 0
    %306 = vmatprep.subr.bf16.mxu0 0
    %307 = vmatpush2.bf16.msra.mxu0 0
    %308 = vmatprep.subr.bf16.mxu0 0
    %309 = vmatpush2.bf16.msra.mxu0 0
    %310 = vmatprep.subr.bf16.mxu0 0
    %311 = vmatpush2.bf16.msra.mxu0 0
    %312 = vmatprep.subr.bf16.mxu0 0
    %313 = vmatpush2.bf16.msra.mxu0 0
    %314 = vmatprep.subr.bf16.mxu0 0
    %315 = vmatpush2.bf16.msra.mxu0 0
    %316 = vmatprep.subr.bf16.mxu0 0
    %317 = vmatpush2.bf16.msra.mxu0 0
    %318 = vmatprep.mubr.bf16.mxu0 0
    %319 = vmatmul.mubr.bf16.gmra.mxu0 %v284
    %v320 = vpop.f32.mrf.mxu0
    %v321 = vadd.f32 %v268, %v320
    %v322 = vpop.f32.mrf.mxu0
    %v323 = vpop.f32.mrf.mxu0
    %v324 = vpop.f32.mrf.mxu0
    %325 = vdwg.mxu0
    %v326 = vmax.f32 %v321, 0.0
    %v327 = vand.u32 2147483647, %v321
    %v328 = vsub.f32 0.0, %v327
    %v329 = vmul.f32 %v328, 1.442695
    %v330 = vpow.pop %v329
    %v331 = vadd.f32 %v330, 1.0
    %v332 = vlog2.pop %v331
    %v333 = vmul.f32 %v332, 0.6931472
    %v334 = vadd.f32 %v326, %v333
    %v335 = vtanh.pop %v334
    %v336 = vmul.f32 %v321, %v335
    %v337 = vpack.c.bf16 %v336, %v336
    %v338 = vld [vmem:[%s4] sm:$0xf]
    %v339 = vld [vmem:[%s4 + $0x4] sm:$0xf]
    %v340 = vld [vmem:[%s4 + $0x8] sm:$0xf]
    %v341 = vld [vmem:[%s4 + $0xc] sm:$0xf]
    %v342 = vld [vmem:[%s4 + $0x10] sm:$0xf]
    %v343 = vld [vmem:[%s4 + $0x14] sm:$0xf]
    %v344 = vld [vmem:[%s4 + $0x18] sm:$0xf]
    %v345 = vld [vmem:[%s4 + $0x1c] sm:$0xf]
    %v346 = vld [vmem:[%s4 + $0x20] sm:$0xf]
    %v347 = vld [vmem:[%s4 + $0x24] sm:$0xf]
    %v348 = vld [vmem:[%s4 + $0x28] sm:$0xf]
    %v349 = vld [vmem:[%s4 + $0x2c] sm:$0xf]
    %v350 = vld [vmem:[%s4 + $0x30] sm:$0xf]
    %v351 = vld [vmem:[%s4 + $0x34] sm:$0xf]
    %v352 = vld [vmem:[%s4 + $0x38] sm:$0xf]
    %v353 = vld [vmem:[%s4 + $0x3c] sm:$0xf]
    %v354 = vld [vmem:[%s5] sm:$0x1]
    %v356 = vlaneseq
    %v357 = vshrl.u32 %v356, 7
    %v358 = vsub.s32 0, %v357
    %v359 = vrot.slane %v354, %v358
    %v377 = vunpack.c.l.b16 %v338
    %v378 = vunpack.c.l.b16 %v339
    %v379 = vunpack.c.l.b16 %v340
    %v380 = vunpack.c.l.b16 %v341
    %v381 = vunpack.c.l.b16 %v342
    %v382 = vunpack.c.l.b16 %v343
    %v383 = vunpack.c.l.b16 %v344
    %v384 = vunpack.c.l.b16 %v345
    %v385 = vunpack.c.l.b16 %v346
    %v386 = vunpack.c.l.b16 %v347
    %v387 = vunpack.c.l.b16 %v348
    %v388 = vunpack.c.l.b16 %v349
    %v389 = vunpack.c.l.b16 %v350
    %v390 = vunpack.c.l.b16 %v351
    %v391 = vunpack.c.l.b16 %v352
    %v392 = vunpack.c.l.b16 %v353
    %v393 = vpack.c.b16 %v378, %v377
    %v394 = vpack.c.b16 %v380, %v379
    %v395 = vpack.c.b16 %v382, %v381
    %v396 = vpack.c.b16 %v384, %v383
    %v397 = vpack.c.b16 %v386, %v385
    %v398 = vpack.c.b16 %v388, %v387
    %v399 = vpack.c.b16 %v390, %v389
    %v400 = vpack.c.b16 %v392, %v391
    %409 = vmatprep.subr.bf16.mxu0 0
    %410 = vmatpush1.bf16.msra.mxu0 %v400
    %411 = vmatprep.subr.bf16.mxu0 0
    %412 = vmatpush1.bf16.msra.mxu0 %v399
    %413 = vmatprep.subr.bf16.mxu0 0
    %414 = vmatpush1.bf16.msra.mxu0 %v398
    %415 = vmatprep.subr.bf16.mxu0 0
    %416 = vmatpush1.bf16.msra.mxu0 %v397
    %417 = vmatprep.subr.bf16.mxu0 0
    %418 = vmatpush1.bf16.msra.mxu0 %v396
    %419 = vmatprep.subr.bf16.mxu0 0
    %420 = vmatpush1.bf16.msra.mxu0 %v395
    %421 = vmatprep.subr.bf16.mxu0 0
    %422 = vmatpush1.bf16.msra.mxu0 %v394
    %423 = vmatprep.subr.bf16.mxu0 0
    %424 = vmatpush1.bf16.msra.mxu0 %v393
    %425 = vmatprep.subr.bf16.mxu0 0
    %426 = vmatpush2.bf16.msra.mxu0 0
    %427 = vmatprep.subr.bf16.mxu0 0
    %428 = vmatpush2.bf16.msra.mxu0 0
    %429 = vmatprep.subr.bf16.mxu0 0
    %430 = vmatpush2.bf16.msra.mxu0 0
    %431 = vmatprep.subr.bf16.mxu0 0
    %432 = vmatpush2.bf16.msra.mxu0 0
    %433 = vmatprep.subr.bf16.mxu0 0
    %434 = vmatpush2.bf16.msra.mxu0 0
    %435 = vmatprep.subr.bf16.mxu0 0
    %436 = vmatpush2.bf16.msra.mxu0 0
    %437 = vmatprep.subr.bf16.mxu0 0
    %438 = vmatpush2.bf16.msra.mxu0 0
    %439 = vmatprep.subr.bf16.mxu0 0
    %440 = vmatpush2.bf16.msra.mxu0 0
    %441 = vmatprep.mubr.bf16.mxu0 0
    %442 = vmatmul.mubr.bf16.gmra.mxu0 %v337
    %v443 = vpop.f32.mrf.mxu0
    %v444 = vadd.f32 %v359, %v443
    %v445 = vpop.f32.mrf.mxu0
    %v446 = vpop.f32.mrf.mxu0
    %v447 = vpop.f32.mrf.mxu0
    %448 = vdwg.mxu0
    %v449 = vpack.c.bf16 %v444, %v444
    %v450 = vld [vmem:[%s6] sm:$0xf]
    %v451 = vld [vmem:[%s6 + $0x4] sm:$0xf]
    %v452 = vld [vmem:[%s6 + $0x8] sm:$0xf]
    %v453 = vld [vmem:[%s6 + $0xc] sm:$0xf]
    %v454 = vld [vmem:[%s7] sm:$0x1]
    %v456 = vlaneseq
    %v457 = vshrl.u32 %v456, 7
    %v458 = vsub.s32 0, %v457
    %v459 = vrot.slane %v454, %v458
    %v465 = vunpack.c.l.b16 %v450
    %v466 = vunpack.c.l.b16 %v451
    %v467 = vunpack.c.l.b16 %v452
    %v468 = vunpack.c.l.b16 %v453
    %v469 = vpack.c.b16 %v466, %v465
    %v470 = vpack.c.b16 %v468, %v467
    %v474 = vsel %vm282, %v449, 0
    %476 = vmatprep.subr.bf16.mxu0 0
    %477 = vmatpush1.bf16.msra.mxu0 0
    %478 = vmatprep.subr.bf16.mxu0 0
    %479 = vmatpush1.bf16.msra.mxu0 0
    %480 = vmatprep.subr.bf16.mxu0 0
    %481 = vmatpush1.bf16.msra.mxu0 0
    %482 = vmatprep.subr.bf16.mxu0 0
    %483 = vmatpush1.bf16.msra.mxu0 0
    %484 = vmatprep.subr.bf16.mxu0 0
    %485 = vmatpush1.bf16.msra.mxu0 0
    %486 = vmatprep.subr.bf16.mxu0 0
    %487 = vmatpush1.bf16.msra.mxu0 0
    %488 = vmatprep.subr.bf16.mxu0 0
    %489 = vmatpush1.bf16.msra.mxu0 %v470
    %490 = vmatprep.subr.bf16.mxu0 0
    %491 = vmatpush1.bf16.msra.mxu0 %v469
    %492 = vmatprep.subr.bf16.mxu0 0
    %493 = vmatpush2.bf16.msra.mxu0 0
    %494 = vmatprep.subr.bf16.mxu0 0
    %495 = vmatpush2.bf16.msra.mxu0 0
    %496 = vmatprep.subr.bf16.mxu0 0
    %497 = vmatpush2.bf16.msra.mxu0 0
    %498 = vmatprep.subr.bf16.mxu0 0
    %499 = vmatpush2.bf16.msra.mxu0 0
    %500 = vmatprep.subr.bf16.mxu0 0
    %501 = vmatpush2.bf16.msra.mxu0 0
    %502 = vmatprep.subr.bf16.mxu0 0
    %503 = vmatpush2.bf16.msra.mxu0 0
    %504 = vmatprep.subr.bf16.mxu0 0
    %505 = vmatpush2.bf16.msra.mxu0 0
    %506 = vmatprep.subr.bf16.mxu0 0
    %507 = vmatpush2.bf16.msra.mxu0 0
    %508 = vmatprep.mubr.bf16.mxu0 0
    %509 = vmatmul.mubr.bf16.gmra.mxu0 %v474
    %v510 = vpop.f32.mrf.mxu0
    %v511 = vadd.f32 %v459, %v510
    %v512 = vpop.f32.mrf.mxu0
    %v513 = vpop.f32.mrf.mxu0
    %v514 = vpop.f32.mrf.mxu0
    %515 = vdwg.mxu0
    %516 = vst [vmem:[#allocation2] sm:$0x3] %v511
    // Predicated region
    $region34: #{tpu_custom_call.1} parent=1 // pred_check
      _
    $region35: #{tpu_custom_call.1} parent=1 // pred_check_branch
      %518 = sbr.rel (0) target = $region37
    $region36: #{tpu_custom_call.1} parent=1 // pred_region
      %s520 = ssub.s32 32, 32
      %521 = vsyncadd [#allocation3], %s520
      %s523 = sshll.u32 [#allocation2], 4
      %s524 = int_to_ptr.vmem [resolvable:$true] %s523
      %526 = dma.vmem_to_hbm [thread:$0]  %s524, 32, %s8, [#allocation3]
    $region37: #{tpu_custom_call.1} parent=1 // pred_fallthru
      _
    // Predicated region
    $region38: #{tpu_custom_call.1} parent=1 // pred_check
      _
    $region39: #{tpu_custom_call.1} parent=1 // pred_check_branch
      %528 = sbr.rel (0) target = $region41
    $region40: #{tpu_custom_call.1} parent=1 // pred_region
      %529 = dma.done [#allocation3], 32
    $region41: #{tpu_custom_call.1} parent=1 // pred_fallthru
      _
    %530 = vsyncpa [#allocation3], 1

</llo_original>
